<compile_context>
chip_gen: v5e
topology: v5e:2x2
jax: 0.10.0
libtpu: 0.0.40
codegen_flags: <defaults>
</compile_context>

<pallas_src>
import math

import jax
import jax.numpy as jnp
from jax import lax
from jax.experimental import pallas as pl
from jax.experimental.pallas import tpu as pltpu


def _round_up(x, m):
    return ((x + m - 1) // m) * m


def _make_mlp_kernel(n_hidden):
    """Kernel specialized for `n_hidden` (Linear+ReLU) layers + final Linear(->1)."""

    def kernel(*refs):
        x_ref = refs[0]
        out_ref = refs[-1]
        p = refs[1:-1]                 # [w1, b1, ..., wN, bN, w_out_row, b_out]

        h = x_ref[...]                 # f32 (tile, d_in), streamed from HBM
        for l in range(n_hidden):
            w = p[2 * l][...]          # bf16 (in_pad, out_pad), resident in VMEM
            bias = p[2 * l + 1][...]   # f32  (1, out_pad)
            # bf16 MXU operands, f32 accumulate, f32 bias + ReLU epilogue (VPU).
            h = jnp.dot(h.astype(jnp.bfloat16), w,
                        preferred_element_type=jnp.float32)
            h = jnp.maximum(h + bias, 0.0)

        w_out = p[-2][...]             # f32 (1, h_last_pad)
        b_out = p[-1][...]             # f32 (1, 1)
        # NT matmul (same dimension numbers as splash-attention q.k^T):
        # (1, H) x (tile, H)^T -> (1, tile): lane-dense output, no relayout needed.
        o = lax.dot_general(w_out, h, (((1,), (1,)), ((), ())),
                            preferred_element_type=jnp.float32) + b_out
        out_ref[...] = o.reshape(out_ref.shape).astype(out_ref.dtype)

    return kernel


def prepare_params(params):
    """Pad (hidden dims -> multiples of 128 lanes) and cast weights ONCE.

    `params` = [(w, b), ...] with w stored (in_dim, out_dim) so the kernel computes
    x @ W + b (equivalent to PyTorch's x @ W.T + b).  Zero padding is inert: padded
    hidden columns stay exactly zero through matmul + zero bias + ReLU.  The input
    dim of the first layer is NOT padded (x streams unpadded).
    """
    *hidden, (w_out, b_out) = params
    prepared = []
    prev_pad = None
    for w, bias in hidden:
        in_dim, out_dim = w.shape
        in_pad = in_dim if prev_pad is None else prev_pad
        out_pad = _round_up(out_dim, 128)
        w_p = jnp.pad(jnp.asarray(w, jnp.float32),
                      ((0, in_pad - in_dim), (0, out_pad - out_dim))).astype(jnp.bfloat16)
        b_p = jnp.pad(jnp.asarray(bias, jnp.float32).reshape(1, -1),
                      ((0, 0), (0, out_pad - out_dim)))
        prepared += [w_p, b_p]
        prev_pad = out_pad
    h_last = w_out.shape[0]
    last_pad = h_last if prev_pad is None else prev_pad
    w_out_row = jnp.pad(jnp.asarray(w_out, jnp.float32).reshape(1, h_last),
                        ((0, 0), (0, last_pad - h_last)))
    b_out_p = jnp.asarray(b_out, jnp.float32).reshape(1, 1)
    prepared += [w_out_row, b_out_p]
    return tuple(prepared)


def nonlinear_model_forward(x, prepared_params, *, tile_b=1024):
    """x: (B, *) any trailing dims (flattened like x.view(B, -1)) -> (B, 1) f32."""
    b = x.shape[0]
    x2d = x.reshape(b, -1)
    if x2d.dtype != jnp.float32:
        x2d = x2d.astype(jnp.float32)
    d_in = x2d.shape[1]
    if prepared_params[0].shape[0] != d_in:
        raise ValueError(
            f"input_dim mismatch: x has {d_in}, params expect {prepared_params[0].shape[0]}")
    n_hidden = (len(prepared_params) - 2) // 2

    # Batch tile: multiple of 16 rows (bf16 sublane packing), never larger than the
    # batch (tail block is partial), large enough to amortize the ~0.35us/step
    # overhead; split once so the v7x megacore sees >= 2 parallel grid steps.
    tile_b = max(16, (int(tile_b) // 16) * 16)
    if b <= 16:
        tile = b                                   # single ragged block == full batch dim
    else:
        tile = min(tile_b, (b // 16) * 16)
        if b >= 256 and pl.cdiv(b, tile) < 2:
            tile = max(16, _round_up(b // 2, 16))  # engage both TensorCores on v7x
    num_tiles = pl.cdiv(b, tile)

    # Generation-aware VMEM budget (~75% of physical): ~96 MiB on v5e/v6e, ~48 MiB on v7x.
    try:
        vmem_cap = int(pltpu.get_tpu_info().vmem_capacity_bytes)
    except Exception:
        vmem_cap = 64 * 1024 * 1024
    vmem_limit = max(32 * 1024 * 1024, min(vmem_cap * 3 // 4, 96 * 1024 * 1024))

    # Advisory cost estimate for XLA's scheduler.
    flops = 0
    prev = d_in
    for l in range(n_hidden):
        out_pad = prepared_params[2 * l].shape[1]
        flops += 2 * b * prev * out_pad
        prev = out_pad
    flops += 2 * b * prev
    bytes_accessed = (int(x2d.size) * 4
                      + sum(int(p.size) * p.dtype.itemsize for p in prepared_params)
                      + b * 4)
    cost = pl.CostEstimate(flops=int(flops), transcendentals=0,
                           bytes_accessed=int(bytes_accessed))

    kernel = _make_mlp_kernel(n_hidden)
    out_shape = jax.ShapeDtypeStruct((num_tiles, 1, tile), jnp.float32)

    def call(resident_kwargs):
        # x: streamed, tiled over batch (auto double-buffered by the pipeline).
        in_specs = [pl.BlockSpec((tile, d_in), lambda i: (i, 0))]
        # Weights/biases: constant index -> resident in VMEM across the whole grid.
        in_specs += [pl.BlockSpec(p.shape, lambda i: (0, 0), **resident_kwargs)
                     for p in prepared_params]
        return pl.pallas_call(
            kernel,
            out_shape=out_shape,
            grid=(num_tiles,),
            in_specs=in_specs,
            out_specs=pl.BlockSpec((1, 1, tile), lambda i: (i, 0, 0)),  # lane-dense
            compiler_params=pltpu.CompilerParams(
                dimension_semantics=("parallel",),
                vmem_limit_bytes=vmem_limit),
            cost_estimate=cost,
        )(x2d, *prepared_params)

    try:
        # Single-buffer the constant-index operands: no wasted second weight buffer.
        out = call({"pipeline_mode": pl.Buffered(1)})
    except Exception:
        # Fallback (default double-buffering) if single-buffering is unsupported here.
        out = call({})

    # Blocks are contiguous batch rows; flatten and drop the ragged tail padding.
    return out.reshape(-1)[:b].reshape(b, 1)


def init_params(key, input_dim, hidden_sizes):
    """PyTorch nn.Linear-style init (uniform +/- 1/sqrt(fan_in)); w stored (in, out)."""
    dims = [input_dim] + list(hidden_sizes) + [1]
    params = []
    for in_dim, out_dim in zip(dims[:-1], dims[1:]):
        key, kw, kb = jax.random.split(key, 3)
        bound = 1.0 / math.sqrt(in_dim)
        w = jax.random.uniform(kw, (in_dim, out_dim), jnp.float32, -bound, bound)
        bias = jax.random.uniform(kb, (out_dim,), jnp.float32, -bound, bound)
        params.append((w, bias))
    return params


def reference_forward_f32(x, params):
    """Pure-f32 reference (PyTorch semantics)."""
    h = x.reshape(x.shape[0], -1).astype(jnp.float32)
    *hidden, (w_out, b_out) = params
    for w, bias in hidden:
        h = jnp.maximum(h @ w + bias.reshape(1, -1), 0.0)
    return h @ w_out + b_out.reshape(1, 1)


def reference_forward_bf16(x, params):
    """Reference mirroring the kernel's bf16-operand / f32-accumulate numerics
    (this is the kernel's numerics contract; drift vs pure-f32 grows with input_dim)."""
    h = x.reshape(x.shape[0], -1).astype(jnp.float32)
    *hidden, (w_out, b_out) = params
    for w, bias in hidden:
        h = jnp.dot(h.astype(jnp.bfloat16), w.astype(jnp.bfloat16),
                    preferred_element_type=jnp.float32)
        h = jnp.maximum(h + bias.reshape(1, -1), 0.0)
    return h @ w_out + b_out.reshape(1, 1)


if __name__ == "__main__":
    key = jax.random.PRNGKey(0)
    kx, kp = jax.random.split(key)

    batch = 2
    feat = (4, 16)               # flattened -> input_dim = 64
    input_dim = 4 * 16
    hidden_sizes = [32, 32]

    x = jax.random.normal(kx, (batch,) + feat, jnp.float32)
    params = init_params(kp, input_dim, hidden_sizes)
    prepared = prepare_params(params)        # pad + cast once, outside the forward

    out = nonlinear_model_forward(x, prepared)
    out = jax.block_until_ready(out)

    assert out.shape == (batch, 1), out.shape
    # Tight check vs the reference with identical bf16-operand / f32-accumulate numerics.
    ref_bf16 = reference_forward_bf16(x, params)
    assert jnp.allclose(out, ref_bf16, atol=2e-3, rtol=2e-3), (out, ref_bf16)
    # Loose check vs the pure-f32 PyTorch-style reference.
    ref_f32 = reference_forward_f32(x, params)
    assert jnp.allclose(out, ref_f32, atol=5e-2, rtol=5e-2), (out, ref_f32)

    print("KERNEL_OK")
</pallas_src>

<mosaic_0001>
module attributes {stable_mosaic.version = 11 : i64} {
  func.func @kernel(%arg0: i32, %arg1: memref<2x64xf32, #tpu.memory_space<vmem>>, %arg2: memref<64x128xbf16, #tpu.memory_space<vmem>>, %arg3: memref<1x128xf32, #tpu.memory_space<vmem>>, %arg4: memref<128x128xbf16, #tpu.memory_space<vmem>>, %arg5: memref<1x128xf32, #tpu.memory_space<vmem>>, %arg6: memref<1x128xf32, #tpu.memory_space<vmem>>, %arg7: memref<1x1xf32, #tpu.memory_space<vmem>>, %arg8: memref<1x1x2xf32, #tpu.memory_space<vmem>>) attributes {dimension_semantics = [#tpu.dimension_semantics<parallel>], iteration_bounds = array<i64: 1>, scalar_prefetch = 0 : i64, scratch_operands = 0 : i64, tpu.core_type = #tpu.core_type<tc>, window_params = [{transform_indices = @transform_0, window_bounds = array<i64: 2, 64>}, {pipeline_mode = #tpu.pipeline_mode<synchronous>, transform_indices = @transform_1, window_bounds = array<i64: 64, 128>}, {pipeline_mode = #tpu.pipeline_mode<synchronous>, transform_indices = @transform_2, window_bounds = array<i64: 1, 128>}, {pipeline_mode = #tpu.pipeline_mode<synchronous>, transform_indices = @transform_3, window_bounds = array<i64: 128, 128>}, {pipeline_mode = #tpu.pipeline_mode<synchronous>, transform_indices = @transform_4, window_bounds = array<i64: 1, 128>}, {pipeline_mode = #tpu.pipeline_mode<synchronous>, transform_indices = @transform_5, window_bounds = array<i64: 1, 128>}, {pipeline_mode = #tpu.pipeline_mode<synchronous>, transform_indices = @transform_6, window_bounds = array<i64: 1, 1>}, {transform_indices = @transform_7, window_bounds = array<i64: 1, 1, 2>}]} {
    %c0 = arith.constant 0 : index
    %c0_0 = arith.constant 0 : index
    %0 = vector.load %arg1[%c0, %c0_0] : memref<2x64xf32, #tpu.memory_space<vmem>>, vector<2x64xf32>
    %c0_1 = arith.constant 0 : index
    %c0_2 = arith.constant 0 : index
    %1 = vector.load %arg2[%c0_1, %c0_2] : memref<64x128xbf16, #tpu.memory_space<vmem>>, vector<64x128xbf16>
    %c0_3 = arith.constant 0 : index
    %c0_4 = arith.constant 0 : index
    %2 = vector.load %arg3[%c0_3, %c0_4] : memref<1x128xf32, #tpu.memory_space<vmem>>, vector<1x128xf32>
    %3 = arith.truncf %0 : vector<2x64xf32> to vector<2x64xbf16>
    %cst = arith.constant dense<0.000000e+00> : vector<2x128xf32>
    %4 = tpu.matmul %3, %1, %cst {dimension_numbers = #tpu.dot_dimension_numbers<[1], [0], [0], [1], [0, 0, 1, 1], [], []>} : vector<2x64xbf16>, vector<64x128xbf16>, vector<2x128xf32> -> vector<2x128xf32>
    %5 = vector.broadcast %2 : vector<1x128xf32> to vector<2x128xf32>
    %6 = arith.addf %4, %5 : vector<2x128xf32>
    %cst_5 = arith.constant 0.000000e+00 : f32
    %7 = vector.broadcast %cst_5 : f32 to vector<2x128xf32>
    %8 = arith.maximumf %6, %7 : vector<2x128xf32>
    %c0_6 = arith.constant 0 : index
    %c0_7 = arith.constant 0 : index
    %9 = vector.load %arg4[%c0_6, %c0_7] : memref<128x128xbf16, #tpu.memory_space<vmem>>, vector<128x128xbf16>
    %c0_8 = arith.constant 0 : index
    %c0_9 = arith.constant 0 : index
    %10 = vector.load %arg5[%c0_8, %c0_9] : memref<1x128xf32, #tpu.memory_space<vmem>>, vector<1x128xf32>
    %11 = arith.truncf %8 : vector<2x128xf32> to vector<2x128xbf16>
    %cst_10 = arith.constant dense<0.000000e+00> : vector<2x128xf32>
    %12 = tpu.matmul %11, %9, %cst_10 {dimension_numbers = #tpu.dot_dimension_numbers<[1], [0], [0], [1], [0, 0, 1, 1], [], []>} : vector<2x128xbf16>, vector<128x128xbf16>, vector<2x128xf32> -> vector<2x128xf32>
    %13 = vector.broadcast %10 : vector<1x128xf32> to vector<2x128xf32>
    %14 = arith.addf %12, %13 : vector<2x128xf32>
    %cst_11 = arith.constant 0.000000e+00 : f32
    %15 = vector.broadcast %cst_11 : f32 to vector<2x128xf32>
    %16 = arith.maximumf %14, %15 : vector<2x128xf32>
    %c0_12 = arith.constant 0 : index
    %c0_13 = arith.constant 0 : index
    %17 = vector.load %arg6[%c0_12, %c0_13] : memref<1x128xf32, #tpu.memory_space<vmem>>, vector<1x128xf32>
    %c0_14 = arith.constant 0 : index
    %c0_15 = arith.constant 0 : index
    %18 = vector.load %arg7[%c0_14, %c0_15] : memref<1x1xf32, #tpu.memory_space<vmem>>, vector<1x1xf32>
    %cst_16 = arith.constant dense<0.000000e+00> : vector<1x2xf32>
    %19 = tpu.matmul %17, %16, %cst_16 {dimension_numbers = #tpu.dot_dimension_numbers<[1], [1], [0], [0], [0, 0, 1, 0], [], []>} : vector<1x128xf32>, vector<2x128xf32>, vector<1x2xf32> -> vector<1x2xf32>
    %20 = vector.broadcast %18 : vector<1x1xf32> to vector<1x2xf32>
    %21 = arith.addf %19, %20 : vector<1x2xf32>
    %22 = vector.shape_cast %21 : vector<1x2xf32> to vector<1x1x2xf32>
    %c0_17 = arith.constant 0 : index
    %c0_18 = arith.constant 0 : index
    %c0_19 = arith.constant 0 : index
    %23 = vector.load %arg8[%c0_17, %c0_18, %c0_19] : memref<1x1x2xf32, #tpu.memory_space<vmem>>, vector<1x1x2xf32>
    tpu.vector_store %arg8[%c0_17, %c0_18, %c0_19], %22 {strides = array<i32>} : memref<1x1x2xf32, #tpu.memory_space<vmem>>, vector<1x1x2xf32>,
    return
  }
  func.func @transform_0(%arg0: i32) -> (i32, i32) {
    %c0_i32 = arith.constant 0 : i32
    %c0_i32_0 = arith.constant 0 : i32
    return %arg0, %c0_i32 : i32, i32
  }
  func.func @transform_1(%arg0: i32) -> (i32, i32) {
    %c0_i32 = arith.constant 0 : i32
    %c0_i32_0 = arith.constant 0 : i32
    %c0_i32_1 = arith.constant 0 : i32
    return %c0_i32, %c0_i32_0 : i32, i32
  }
  func.func @transform_2(%arg0: i32) -> (i32, i32) {
    %c0_i32 = arith.constant 0 : i32
    %c0_i32_0 = arith.constant 0 : i32
    %c0_i32_1 = arith.constant 0 : i32
    return %c0_i32, %c0_i32_0 : i32, i32
  }
  func.func @transform_3(%arg0: i32) -> (i32, i32) {
    %c0_i32 = arith.constant 0 : i32
    %c0_i32_0 = arith.constant 0 : i32
    %c0_i32_1 = arith.constant 0 : i32
    return %c0_i32, %c0_i32_0 : i32, i32
  }
  func.func @transform_4(%arg0: i32) -> (i32, i32) {
    %c0_i32 = arith.constant 0 : i32
    %c0_i32_0 = arith.constant 0 : i32
    %c0_i32_1 = arith.constant 0 : i32
    return %c0_i32, %c0_i32_0 : i32, i32
  }
  func.func @transform_5(%arg0: i32) -> (i32, i32) {
    %c0_i32 = arith.constant 0 : i32
    %c0_i32_0 = arith.constant 0 : i32
    %c0_i32_1 = arith.constant 0 : i32
    return %c0_i32, %c0_i32_0 : i32, i32
  }
  func.func @transform_6(%arg0: i32) -> (i32, i32) {
    %c0_i32 = arith.constant 0 : i32
    %c0_i32_0 = arith.constant 0 : i32
    %c0_i32_1 = arith.constant 0 : i32
    return %c0_i32, %c0_i32_0 : i32, i32
  }
  func.func @transform_7(%arg0: i32) -> (i32, i32, i32) {
    %c0_i32 = arith.constant 0 : i32
    %c0_i32_0 = arith.constant 0 : i32
    %c0_i32_1 = arith.constant 0 : i32
    return %arg0, %c0_i32, %c0_i32_0 : i32, i32, i32
  }
}

module attributes {stable_mosaic.version = 11 : i64} {
  func.func @kernel(%arg0: i32, %arg1: memref<2x64xf32, #tpu.memory_space<vmem>>, %arg2: memref<64x128xbf16, #tpu.memory_space<vmem>>, %arg3: memref<1x128xf32, #tpu.memory_space<vmem>>, %arg4: memref<128x128xbf16, #tpu.memory_space<vmem>>, %arg5: memref<1x128xf32, #tpu.memory_space<vmem>>, %arg6: memref<1x128xf32, #tpu.memory_space<vmem>>, %arg7: memref<1x1xf32, #tpu.memory_space<vmem>>, %arg8: memref<1x1x2xf32, #tpu.memory_space<vmem>>) attributes {dimension_semantics = [#tpu.dimension_semantics<parallel>], iteration_bounds = array<i64: 1>, scalar_prefetch = 0 : i64, scratch_operands = 0 : i64, tpu.core_type = #tpu.core_type<tc>, window_params = [{transform_indices = @transform_0, window_bounds = array<i64: 2, 64>}, {pipeline_mode = #tpu.pipeline_mode<synchronous>, transform_indices = @transform_1, window_bounds = array<i64: 64, 128>}, {pipeline_mode = #tpu.pipeline_mode<synchronous>, transform_indices = @transform_2, window_bounds = array<i64: 1, 128>}, {pipeline_mode = #tpu.pipeline_mode<synchronous>, transform_indices = @transform_3, window_bounds = array<i64: 128, 128>}, {pipeline_mode = #tpu.pipeline_mode<synchronous>, transform_indices = @transform_4, window_bounds = array<i64: 1, 128>}, {pipeline_mode = #tpu.pipeline_mode<synchronous>, transform_indices = @transform_5, window_bounds = array<i64: 1, 128>}, {pipeline_mode = #tpu.pipeline_mode<synchronous>, transform_indices = @transform_6, window_bounds = array<i64: 1, 1>}, {transform_indices = @transform_7, window_bounds = array<i64: 1, 1, 2>}]} {
    %c0 = arith.constant 0 : index
    %c0_0 = arith.constant 0 : index
    %0 = vector.load %arg1[%c0, %c0_0] : memref<2x64xf32, #tpu.memory_space<vmem>>, vector<2x64xf32>
    %c0_1 = arith.constant 0 : index
    %c0_2 = arith.constant 0 : index
    %1 = vector.load %arg2[%c0_1, %c0_2] : memref<64x128xbf16, #tpu.memory_space<vmem>>, vector<64x128xbf16>
    %c0_3 = arith.constant 0 : index
    %c0_4 = arith.constant 0 : index
    %2 = vector.load %arg3[%c0_3, %c0_4] : memref<1x128xf32, #tpu.memory_space<vmem>>, vector<1x128xf32>
    %3 = arith.truncf %0 : vector<2x64xf32> to vector<2x64xbf16>
    %cst = arith.constant dense<0.000000e+00> : vector<2x128xf32>
    %4 = tpu.matmul %3, %1, %cst {dimension_numbers = #tpu.dot_dimension_numbers<[1], [0], [0], [1], [0, 0, 1, 1], [], []>} : vector<2x64xbf16>, vector<64x128xbf16>, vector<2x128xf32> -> vector<2x128xf32>
    %5 = vector.broadcast %2 : vector<1x128xf32> to vector<2x128xf32>
    %6 = arith.addf %4, %5 : vector<2x128xf32>
    %cst_5 = arith.constant 0.000000e+00 : f32
    %7 = vector.broadcast %cst_5 : f32 to vector<2x128xf32>
    %8 = arith.maximumf %6, %7 : vector<2x128xf32>
    %c0_6 = arith.constant 0 : index
    %c0_7 = arith.constant 0 : index
    %9 = vector.load %arg4[%c0_6, %c0_7] : memref<128x128xbf16, #tpu.memory_space<vmem>>, vector<128x128xbf16>
    %c0_8 = arith.constant 0 : index
    %c0_9 = arith.constant 0 : index
    %10 = vector.load %arg5[%c0_8, %c0_9] : memref<1x128xf32, #tpu.memory_space<vmem>>, vector<1x128xf32>
    %11 = arith.truncf %8 : vector<2x128xf32> to vector<2x128xbf16>
    %cst_10 = arith.constant dense<0.000000e+00> : vector<2x128xf32>
    %12 = tpu.matmul %11, %9, %cst_10 {dimension_numbers = #tpu.dot_dimension_numbers<[1], [0], [0], [1], [0, 0, 1, 1], [], []>} : vector<2x128xbf16>, vector<128x128xbf16>, vector<2x128xf32> -> vector<2x128xf32>
    %13 = vector.broadcast %10 : vector<1x128xf32> to vector<2x128xf32>
    %14 = arith.addf %12, %13 : vector<2x128xf32>
    %cst_11 = arith.constant 0.000000e+00 : f32
    %15 = vector.broadcast %cst_11 : f32 to vector<2x128xf32>
    %16 = arith.maximumf %14, %15 : vector<2x128xf32>
    %c0_12 = arith.constant 0 : index
    %c0_13 = arith.constant 0 : index
    %17 = vector.load %arg6[%c0_12, %c0_13] : memref<1x128xf32, #tpu.memory_space<vmem>>, vector<1x128xf32>
    %c0_14 = arith.constant 0 : index
    %c0_15 = arith.constant 0 : index
    %18 = vector.load %arg7[%c0_14, %c0_15] : memref<1x1xf32, #tpu.memory_space<vmem>>, vector<1x1xf32>
    %cst_16 = arith.constant dense<0.000000e+00> : vector<1x2xf32>
    %19 = tpu.matmul %17, %16, %cst_16 {dimension_numbers = #tpu.dot_dimension_numbers<[1], [1], [0], [0], [0, 0, 1, 0], [], []>} : vector<1x128xf32>, vector<2x128xf32>, vector<1x2xf32> -> vector<1x2xf32>
    %20 = vector.broadcast %18 : vector<1x1xf32> to vector<1x2xf32>
    %21 = arith.addf %19, %20 : vector<1x2xf32>
    %22 = vector.shape_cast %21 : vector<1x2xf32> to vector<1x1x2xf32>
    %c0_17 = arith.constant 0 : index
    %c0_18 = arith.constant 0 : index
    %c0_19 = arith.constant 0 : index
    %23 = vector.load %arg8[%c0_17, %c0_18, %c0_19] : memref<1x1x2xf32, #tpu.memory_space<vmem>>, vector<1x1x2xf32>
    tpu.vector_store %arg8[%c0_17, %c0_18, %c0_19], %22 {strides = array<i32>} : memref<1x1x2xf32, #tpu.memory_space<vmem>>, vector<1x1x2xf32>,
    return
  }
  func.func @transform_0(%arg0: i32) -> (i32, i32) {
    %c0_i32 = arith.constant 0 : i32
    %c0_i32_0 = arith.constant 0 : i32
    return %arg0, %c0_i32 : i32, i32
  }
  func.func @transform_1(%arg0: i32) -> (i32, i32) {
    %c0_i32 = arith.constant 0 : i32
    %c0_i32_0 = arith.constant 0 : i32
    %c0_i32_1 = arith.constant 0 : i32
    return %c0_i32, %c0_i32_0 : i32, i32
  }
  func.func @transform_2(%arg0: i32) -> (i32, i32) {
    %c0_i32 = arith.constant 0 : i32
    %c0_i32_0 = arith.constant 0 : i32
    %c0_i32_1 = arith.constant 0 : i32
    return %c0_i32, %c0_i32_0 : i32, i32
  }
  func.func @transform_3(%arg0: i32) -> (i32, i32) {
    %c0_i32 = arith.constant 0 : i32
    %c0_i32_0 = arith.constant 0 : i32
    %c0_i32_1 = arith.constant 0 : i32
    return %c0_i32, %c0_i32_0 : i32, i32
  }
  func.func @transform_4(%arg0: i32) -> (i32, i32) {
    %c0_i32 = arith.constant 0 : i32
    %c0_i32_0 = arith.constant 0 : i32
    %c0_i32_1 = arith.constant 0 : i32
    return %c0_i32, %c0_i32_0 : i32, i32
  }
  func.func @transform_5(%arg0: i32) -> (i32, i32) {
    %c0_i32 = arith.constant 0 : i32
    %c0_i32_0 = arith.constant 0 : i32
    %c0_i32_1 = arith.constant 0 : i32
    return %c0_i32, %c0_i32_0 : i32, i32
  }
  func.func @transform_6(%arg0: i32) -> (i32, i32) {
    %c0_i32 = arith.constant 0 : i32
    %c0_i32_0 = arith.constant 0 : i32
    %c0_i32_1 = arith.constant 0 : i32
    return %c0_i32, %c0_i32_0 : i32, i32
  }
  func.func @transform_7(%arg0: i32) -> (i32, i32, i32) {
    %c0_i32 = arith.constant 0 : i32
    %c0_i32_0 = arith.constant 0 : i32
    %c0_i32_1 = arith.constant 0 : i32
    return %arg0, %c0_i32, %c0_i32_0 : i32, i32, i32
  }
}

</mosaic_0001>

<llo_original>
// kernel: tpu_custom_call.1
$region0: #{tpu_custom_call.1}
  #allocation0 [shape = 'u32[]', space=smem, size = 0x4, offset = 0x4, fixed_abs, tag = 'smem constant byte address 0x4 - core index']
  #allocation1 [shape = 'u32[72,128]{1,0:T(1,128)}', space=vmem, size = 0x9000, scoped, tag = 'internal scratch']
  #allocation2 [shape = 'f32[1,1]{1,0:T(1,128)S(1)}', space=vmem, size = 0x200, scoped, tag = 'scoped memory for tpu_custom_call.1']
  %s0 = inlined_call_operand.vmem [shape: f32[2,64], index: 0, kind: input, shape index: {}]
  %s1 = inlined_call_operand.hbm [shape: bf16[64,128], index: 1, kind: input, shape index: {}]
  %s2 = inlined_call_operand.vmem [shape: f32[1,128], index: 2, kind: input, shape index: {}]
  %s3 = inlined_call_operand.hbm [shape: bf16[128,128], index: 3, kind: input, shape index: {}]
  %s4 = inlined_call_operand.vmem [shape: f32[1,128], index: 4, kind: input, shape index: {}]
  %s5 = inlined_call_operand.vmem [shape: f32[1,128], index: 5, kind: input, shape index: {}]
  %s6 = inlined_call_operand.<no memory space> [shape: f32[1,1], index: 6, kind: input, shape index: {}]
  %s7 = inlined_call_operand.hbm [shape: f32[1,1,2], index: 7, kind: output, shape index: {}]
  %s8 = sld [smem:[#allocation0]]
  $region46: #{tpu_custom_call.1} parent=0
    _
  %s10 = ssub.s32 1, %s8
  %s11 = scalar_select 0, %s10, %s8
  %v12 = vstv %s6
  %13 = vst [vmem:[#allocation2] sm:$0x1] %v12
  $region1: #{tpu_custom_call.1} parent=0
    #allocation3 [shape = 'u8[16384]{0}', space=vmem, size = 0x4000, scoped, tag = 'input window, operand 1, single buffered']
    #allocation4 [shape = 's32[1]{0}', space=sflag, size = 0x4, scoped, tag = 'scoped memory for tpu_custom_call.1']
    #allocation5 [shape = 's32[1]{0}', space=sflag, size = 0x4, scoped, tag = 'scoped memory for tpu_custom_call.1']
    #allocation6 [shape = 'u8[32768]{0}', space=vmem, size = 0x8000, scoped, tag = 'input window, operand 3, single buffered']
    #allocation7 [shape = 's32[1]{0}', space=sflag, size = 0x4, scoped, tag = 'scoped memory for tpu_custom_call.1']
    #allocation8 [shape = 'u8[512]{0}', space=vmem, size = 0x400, scoped, tag = 'output window, operand 0, single buffered']
    %14 = vsyncpa [#allocation4], 0
    %15 = vsyncpa [#allocation7], 0
    %16 = vsyncpa [#allocation5], 0
    // Predicated region
    $region2: #{tpu_custom_call.1} parent=1 // pred_check
      _
    $region3: #{tpu_custom_call.1} parent=1 // pred_check_branch
      %18 = sbr.rel (0) target = $region5
    $region4: #{tpu_custom_call.1} parent=1 // pred_region
      _
    $region5: #{tpu_custom_call.1} parent=1 // pred_fallthru
      _
    // Predicated region
    $region6: #{tpu_custom_call.1} parent=1 // pred_check
      _
    $region7: #{tpu_custom_call.1} parent=1 // pred_check_branch
      %20 = sbr.rel (0) target = $region9
    $region8: #{tpu_custom_call.1} parent=1 // pred_region
      %22 = vsyncadd [#allocation4], 0
      %s23 = sshll.u32 %s1, 4
      %s24 = int_to_ptr.hbm [resolvable:$true] %s23
      %s25 = sshll.u32 [#allocation3], 4
      %s26 = int_to_ptr.vmem [resolvable:$true] %s25
      %31 = dma.hbm_to_vmem [thread:$0]  %s24, 512, %s26, [#allocation4], 64, 64, 4
    $region9: #{tpu_custom_call.1} parent=1 // pred_fallthru
      _
    // Predicated region
    $region10: #{tpu_custom_call.1} parent=1 // pred_check
      _
    $region11: #{tpu_custom_call.1} parent=1 // pred_check_branch
      %33 = sbr.rel (0) target = $region13
    $region12: #{tpu_custom_call.1} parent=1 // pred_region
      _
    $region13: #{tpu_custom_call.1} parent=1 // pred_fallthru
      _
    // Predicated region
    $region14: #{tpu_custom_call.1} parent=1 // pred_check
      _
    $region15: #{tpu_custom_call.1} parent=1 // pred_check_branch
      %35 = sbr.rel (0) target = $region17
    $region16: #{tpu_custom_call.1} parent=1 // pred_region
      %37 = vsyncadd [#allocation7], 0
      %s38 = sshll.u32 %s3, 4
      %s39 = int_to_ptr.hbm [resolvable:$true] %s38
      %s40 = sshll.u32 [#allocation6], 4
      %s41 = int_to_ptr.vmem [resolvable:$true] %s40
      %46 = dma.hbm_to_vmem [thread:$0]  %s39, 1024, %s41, [#allocation7], 64, 64, 4
    $region17: #{tpu_custom_call.1} parent=1 // pred_fallthru
      _
    // Predicated region
    $region18: #{tpu_custom_call.1} parent=1 // pred_check
      _
    $region19: #{tpu_custom_call.1} parent=1 // pred_check_branch
      %48 = sbr.rel (0) target = $region21
    $region20: #{tpu_custom_call.1} parent=1 // pred_region
      _
    $region21: #{tpu_custom_call.1} parent=1 // pred_fallthru
      _
    // Predicated region
    $region22: #{tpu_custom_call.1} parent=1 // pred_check
      _
    $region23: #{tpu_custom_call.1} parent=1 // pred_check_branch
      %50 = sbr.rel (0) target = $region25
    $region24: #{tpu_custom_call.1} parent=1 // pred_region
      _
    $region25: #{tpu_custom_call.1} parent=1 // pred_fallthru
      _
    // Predicated region
    $region26: #{tpu_custom_call.1} parent=1 // pred_check
      _
    $region27: #{tpu_custom_call.1} parent=1 // pred_check_branch
      %52 = sbr.rel (0) target = $region29
    $region28: #{tpu_custom_call.1} parent=1 // pred_region
      _
    $region29: #{tpu_custom_call.1} parent=1 // pred_fallthru
      _
    // Predicated region
    $region30: #{tpu_custom_call.1} parent=1 // pred_check
      _
    $region31: #{tpu_custom_call.1} parent=1 // pred_check_branch
      %54 = sbr.rel (0) target = $region33
    $region32: #{tpu_custom_call.1} parent=1 // pred_region
      %56 = dma.done [#allocation4], 512
    $region33: #{tpu_custom_call.1} parent=1 // pred_fallthru
      _
    // Predicated region
    $region34: #{tpu_custom_call.1} parent=1 // pred_check
      _
    $region35: #{tpu_custom_call.1} parent=1 // pred_check_branch
      %58 = sbr.rel (0) target = $region37
    $region36: #{tpu_custom_call.1} parent=1 // pred_region
      %60 = dma.done [#allocation7], 1024
    $region37: #{tpu_custom_call.1} parent=1 // pred_fallthru
      _
    %v62 = vld [vmem:[%s0] sm:$0x3]
    %v63 = vld [vmem:[#allocation3] sm:$0xf]
    %v64 = vld [vmem:[#allocation3 + $0x4] sm:$0xf]
    %v65 = vld [vmem:[#allocation3 + $0x8] sm:$0xf]
    %v66 = vld [vmem:[#allocation3 + $0xc] sm:$0xf]
    %v67 = vld [vmem:[#allocation3 + $0x10] sm:$0xf]
    %v68 = vld [vmem:[#allocation3 + $0x14] sm:$0xf]
    %v69 = vld [vmem:[#allocation3 + $0x18] sm:$0xf]
    %v70 = vld [vmem:[#allocation3 + $0x1c] sm:$0xf]
    %v71 = vld [vmem:[%s2] sm:$0x1]
    %v72 = vpack.c.bf16 %v62, %v62
    %v74 = vperm.slane %v71, 0
    %v84 = vunpack.c.l.b16 %v63
    %v85 = vunpack.c.l.b16 %v64
    %v86 = vunpack.c.l.b16 %v65
    %v87 = vunpack.c.l.b16 %v66
    %v88 = vunpack.c.l.b16 %v67
    %v89 = vunpack.c.l.b16 %v68
    %v90 = vunpack.c.l.b16 %v69
    %v91 = vunpack.c.l.b16 %v70
    %v92 = vpack.c.b16 %v85, %v84
    %v93 = vpack.c.b16 %v87, %v86
    %v94 = vpack.c.b16 %v89, %v88
    %v95 = vpack.c.b16 %v91, %v90
    %vm100 = vcmask 523264
    %v102 = vsel %vm100, %v72, 0
    %104 = vmatpush.bf16.msra.mxu0 0
    %105 = vmatpush.bf16.msra.mxu0 0
    %106 = vmatpush.bf16.msra.mxu0 0
    %107 = vmatpush.bf16.msra.mxu0 0
    %108 = vmatpush.bf16.msra.mxu0 %v95
    %109 = vmatpush.bf16.msra.mxu0 %v94
    %110 = vmatpush.bf16.msra.mxu0 %v93
    %111 = vmatpush.bf16.msra.mxu0 %v92
    %112 = vmatmul.bf16.gmra.mxu0 %v102
    %v113 = vpop.f32.mrf.mxu0
    %v114 = vadd.f32 %v74, %v113
    %v115 = vpop.f32.mrf.mxu0
    %116 = vdwg.mxu0
    %v117 = vmax.f32 %v114, 0.0
    %v118 = vld [vmem:[#allocation6] sm:$0xf]
    %v119 = vld [vmem:[#allocation6 + $0x4] sm:$0xf]
    %v120 = vld [vmem:[#allocation6 + $0x8] sm:$0xf]
    %v121 = vld [vmem:[#allocation6 + $0xc] sm:$0xf]
    %v122 = vld [vmem:[#allocation6 + $0x10] sm:$0xf]
    %v123 = vld [vmem:[#allocation6 + $0x14] sm:$0xf]
    %v124 = vld [vmem:[#allocation6 + $0x18] sm:$0xf]
    %v125 = vld [vmem:[#allocation6 + $0x1c] sm:$0xf]
    %v126 = vld [vmem:[#allocation6 + $0x20] sm:$0xf]
    %v127 = vld [vmem:[#allocation6 + $0x24] sm:$0xf]
    %v128 = vld [vmem:[#allocation6 + $0x28] sm:$0xf]
    %v129 = vld [vmem:[#allocation6 + $0x2c] sm:$0xf]
    %v130 = vld [vmem:[#allocation6 + $0x30] sm:$0xf]
    %v131 = vld [vmem:[#allocation6 + $0x34] sm:$0xf]
    %v132 = vld [vmem:[#allocation6 + $0x38] sm:$0xf]
    %v133 = vld [vmem:[#allocation6 + $0x3c] sm:$0xf]
    %v134 = vld [vmem:[%s4] sm:$0x1]
    %v135 = vpack.c.bf16 %v117, %v117
    %v137 = vperm.slane %v134, 0
    %v155 = vunpack.c.l.b16 %v118
    %v156 = vunpack.c.l.b16 %v119
    %v157 = vunpack.c.l.b16 %v120
    %v158 = vunpack.c.l.b16 %v121
    %v159 = vunpack.c.l.b16 %v122
    %v160 = vunpack.c.l.b16 %v123
    %v161 = vunpack.c.l.b16 %v124
    %v162 = vunpack.c.l.b16 %v125
    %v163 = vunpack.c.l.b16 %v126
    %v164 = vunpack.c.l.b16 %v127
    %v165 = vunpack.c.l.b16 %v128
    %v166 = vunpack.c.l.b16 %v129
    %v167 = vunpack.c.l.b16 %v130
    %v168 = vunpack.c.l.b16 %v131
    %v169 = vunpack.c.l.b16 %v132
    %v170 = vunpack.c.l.b16 %v133
    %v171 = vpack.c.b16 %v156, %v155
    %v172 = vpack.c.b16 %v158, %v157
    %v173 = vpack.c.b16 %v160, %v159
    %v174 = vpack.c.b16 %v162, %v161
    %v175 = vpack.c.b16 %v164, %v163
    %v176 = vpack.c.b16 %v166, %v165
    %v177 = vpack.c.b16 %v168, %v167
    %v178 = vpack.c.b16 %v170, %v169
    %187 = vmatpush.bf16.msra.mxu0 %v178
    %188 = vmatpush.bf16.msra.mxu0 %v177
    %189 = vmatpush.bf16.msra.mxu0 %v176
    %190 = vmatpush.bf16.msra.mxu0 %v175
    %191 = vmatpush.bf16.msra.mxu0 %v174
    %192 = vmatpush.bf16.msra.mxu0 %v173
    %193 = vmatpush.bf16.msra.mxu0 %v172
    %194 = vmatpush.bf16.msra.mxu0 %v171
    %195 = vmatmul.bf16.gmra.mxu0 %v135
    %v196 = vpop.f32.mrf.mxu0
    %v197 = vadd.f32 %v137, %v196
    %v198 = vpop.f32.mrf.mxu0
    %199 = vdwg.mxu0
    %v200 = vmax.f32 %v197, 0.0
    %v201 = vld [vmem:[%s5] sm:$0x1]
    %v202 = vld [vmem:[#allocation2] sm:$0x1]
    %204 = vset.pattern.permute.xlu0 0
    %205 = vperm.xlu0 %204, %v202
    %v206 = vpop.permute.xlu0 %205
    %v208 = vperm.slane %v206, 0
    %209 = vmatpush.xpose.msra.mxu0 0.0
    %210 = vmatpush.xpose.msra.mxu0 0.0
    %211 = vmatpush.xpose.msra.mxu0 0.0
    %212 = vmatpush.xpose.msra.mxu0 0.0
    %213 = vmatpush.xpose.msra.mxu0 0.0
    %214 = vmatpush.xpose.msra.mxu0 0.0
    %215 = vmatpush.xpose.msra.mxu0 0.0
    %216 = vmatpush.xpose.msra.mxu0 0.0
    %217 = vmatpush.xpose.msra.mxu0 0.0
    %218 = vmatpush.xpose.msra.mxu0 0.0
    %219 = vmatpush.xpose.msra.mxu0 0.0
    %220 = vmatpush.xpose.msra.mxu0 0.0
    %221 = vmatpush.xpose.msra.mxu0 0.0
    %222 = vmatpush.xpose.msra.mxu0 0.0
    %223 = vmatpush.xpose.msra.mxu0 0.0
    %224 = vmatpush.xpose.msra.mxu0 %v200
    %225 = vmatmul.f32.gmra.mxu0 %v201
    %v226 = vpop.f32.mrf.mxu0
    %v227 = vadd.f32 %v208, %v226
    %228 = vdwg.mxu0
    %vm229 = vcmask 8192
    %230 = vst.msk [vmem:[#allocation8] sm:$0x1] %vm229, %v227
    // Predicated region
    $region38: #{tpu_custom_call.1} parent=1 // pred_check
      _
    $region39: #{tpu_custom_call.1} parent=1 // pred_check_branch
      %232 = sbr.rel (0) target = $region41
    $region40: #{tpu_custom_call.1} parent=1 // pred_region
      %234 = vsyncadd [#allocation5], 0
      %s236 = sshll.u32 [#allocation8], 4
      %s237 = int_to_ptr.vmem [resolvable:$true] %s236
      %s238 = sshll.u32 %s7, 4
      %s239 = int_to_ptr.hbm [resolvable:$true] %s238
      %241 = dma.vmem_to_hbm [thread:$0]  %s237, 16, %s239, [#allocation5]
    $region41: #{tpu_custom_call.1} parent=1 // pred_fallthru
      _
    // Predicated region
    $region42: #{tpu_custom_call.1} parent=1 // pred_check
      _
    $region43: #{tpu_custom_call.1} parent=1 // pred_check_branch
      %243 = sbr.rel (0) target = $region45
    $region44: #{tpu_custom_call.1} parent=1 // pred_region
      %245 = dma.done [#allocation5], 16
    $region45: #{tpu_custom_call.1} parent=1 // pred_fallthru
      _
    %246 = vsyncpa [#allocation4], 1
    %247 = vsyncpa [#allocation7], 1
    %248 = vsyncpa [#allocation5], 1

// kernel: tpu_custom_call.1
$region0: #{tpu_custom_call.1}
  #allocation0 [shape = 'u32[]', space=smem, size = 0x4, offset = 0x4, fixed_abs, tag = 'smem constant byte address 0x4 - core index']
  #allocation1 [shape = 'u32[72,128]{1,0:T(1,128)}', space=vmem, size = 0x9000, scoped, tag = 'internal scratch']
  #allocation2 [shape = 'f32[1,1]{1,0:T(1,128)S(1)}', space=vmem, size = 0x200, scoped, tag = 'scoped memory for tpu_custom_call.1']
  %s0 = inlined_call_operand.vmem [shape: f32[2,64], index: 0, kind: input, shape index: {}]
  %s1 = inlined_call_operand.hbm [shape: bf16[64,128], index: 1, kind: input, shape index: {}]
  %s2 = inlined_call_operand.vmem [shape: f32[1,128], index: 2, kind: input, shape index: {}]
  %s3 = inlined_call_operand.hbm [shape: bf16[128,128], index: 3, kind: input, shape index: {}]
  %s4 = inlined_call_operand.vmem [shape: f32[1,128], index: 4, kind: input, shape index: {}]
  %s5 = inlined_call_operand.vmem [shape: f32[1,128], index: 5, kind: input, shape index: {}]
  %s6 = inlined_call_operand.<no memory space> [shape: f32[1,1], index: 6, kind: input, shape index: {}]
  %s7 = inlined_call_operand.hbm [shape: f32[1,1,2], index: 7, kind: output, shape index: {}]
  %s8 = sld [smem:[#allocation0]]
  $region46: #{tpu_custom_call.1} parent=0
    _
  %s10 = ssub.s32 1, %s8
  %s11 = scalar_select 0, %s10, %s8
  %v12 = vstv %s6
  %13 = vst [vmem:[#allocation2] sm:$0x1] %v12
  $region1: #{tpu_custom_call.1} parent=0
    #allocation3 [shape = 'u8[16384]{0}', space=vmem, size = 0x4000, scoped, tag = 'input window, operand 1, single buffered']
    #allocation4 [shape = 's32[1]{0}', space=sflag, size = 0x4, scoped, tag = 'scoped memory for tpu_custom_call.1']
    #allocation5 [shape = 's32[1]{0}', space=sflag, size = 0x4, scoped, tag = 'scoped memory for tpu_custom_call.1']
    #allocation6 [shape = 'u8[32768]{0}', space=vmem, size = 0x8000, scoped, tag = 'input window, operand 3, single buffered']
    #allocation7 [shape = 's32[1]{0}', space=sflag, size = 0x4, scoped, tag = 'scoped memory for tpu_custom_call.1']
    #allocation8 [shape = 'u8[512]{0}', space=vmem, size = 0x400, scoped, tag = 'output window, operand 0, single buffered']
    %14 = vsyncpa [#allocation4], 0
    %15 = vsyncpa [#allocation7], 0
    %16 = vsyncpa [#allocation5], 0
    // Predicated region
    $region2: #{tpu_custom_call.1} parent=1 // pred_check
      _
    $region3: #{tpu_custom_call.1} parent=1 // pred_check_branch
      %18 = sbr.rel (0) target = $region5
    $region4: #{tpu_custom_call.1} parent=1 // pred_region
      _
    $region5: #{tpu_custom_call.1} parent=1 // pred_fallthru
      _
    // Predicated region
    $region6: #{tpu_custom_call.1} parent=1 // pred_check
      _
    $region7: #{tpu_custom_call.1} parent=1 // pred_check_branch
      %20 = sbr.rel (0) target = $region9
    $region8: #{tpu_custom_call.1} parent=1 // pred_region
      %22 = vsyncadd [#allocation4], 0
      %s23 = sshll.u32 %s1, 4
      %s24 = int_to_ptr.hbm [resolvable:$true] %s23
      %s25 = sshll.u32 [#allocation3], 4
      %s26 = int_to_ptr.vmem [resolvable:$true] %s25
      %31 = dma.hbm_to_vmem [thread:$0]  %s24, 512, %s26, [#allocation4], 64, 64, 4
    $region9: #{tpu_custom_call.1} parent=1 // pred_fallthru
      _
    // Predicated region
    $region10: #{tpu_custom_call.1} parent=1 // pred_check
      _
    $region11: #{tpu_custom_call.1} parent=1 // pred_check_branch
      %33 = sbr.rel (0) target = $region13
    $region12: #{tpu_custom_call.1} parent=1 // pred_region
      _
    $region13: #{tpu_custom_call.1} parent=1 // pred_fallthru
      _
    // Predicated region
    $region14: #{tpu_custom_call.1} parent=1 // pred_check
      _
    $region15: #{tpu_custom_call.1} parent=1 // pred_check_branch
      %35 = sbr.rel (0) target = $region17
    $region16: #{tpu_custom_call.1} parent=1 // pred_region
      %37 = vsyncadd [#allocation7], 0
      %s38 = sshll.u32 %s3, 4
      %s39 = int_to_ptr.hbm [resolvable:$true] %s38
      %s40 = sshll.u32 [#allocation6], 4
      %s41 = int_to_ptr.vmem [resolvable:$true] %s40
      %46 = dma.hbm_to_vmem [thread:$0]  %s39, 1024, %s41, [#allocation7], 64, 64, 4
    $region17: #{tpu_custom_call.1} parent=1 // pred_fallthru
      _
    // Predicated region
    $region18: #{tpu_custom_call.1} parent=1 // pred_check
      _
    $region19: #{tpu_custom_call.1} parent=1 // pred_check_branch
      %48 = sbr.rel (0) target = $region21
    $region20: #{tpu_custom_call.1} parent=1 // pred_region
      _
    $region21: #{tpu_custom_call.1} parent=1 // pred_fallthru
      _
    // Predicated region
    $region22: #{tpu_custom_call.1} parent=1 // pred_check
      _
    $region23: #{tpu_custom_call.1} parent=1 // pred_check_branch
      %50 = sbr.rel (0) target = $region25
    $region24: #{tpu_custom_call.1} parent=1 // pred_region
      _
    $region25: #{tpu_custom_call.1} parent=1 // pred_fallthru
      _
    // Predicated region
    $region26: #{tpu_custom_call.1} parent=1 // pred_check
      _
    $region27: #{tpu_custom_call.1} parent=1 // pred_check_branch
      %52 = sbr.rel (0) target = $region29
    $region28: #{tpu_custom_call.1} parent=1 // pred_region
      _
    $region29: #{tpu_custom_call.1} parent=1 // pred_fallthru
      _
    // Predicated region
    $region30: #{tpu_custom_call.1} parent=1 // pred_check
      _
    $region31: #{tpu_custom_call.1} parent=1 // pred_check_branch
      %54 = sbr.rel (0) target = $region33
    $region32: #{tpu_custom_call.1} parent=1 // pred_region
      %56 = dma.done [#allocation4], 512
    $region33: #{tpu_custom_call.1} parent=1 // pred_fallthru
      _
    // Predicated region
    $region34: #{tpu_custom_call.1} parent=1 // pred_check
      _
    $region35: #{tpu_custom_call.1} parent=1 // pred_check_branch
      %58 = sbr.rel (0) target = $region37
    $region36: #{tpu_custom_call.1} parent=1 // pred_region
      %60 = dma.done [#allocation7], 1024
    $region37: #{tpu_custom_call.1} parent=1 // pred_fallthru
      _
    %v62 = vld [vmem:[%s0] sm:$0x3]
    %v63 = vld [vmem:[#allocation3] sm:$0xf]
    %v64 = vld [vmem:[#allocation3 + $0x4] sm:$0xf]
    %v65 = vld [vmem:[#allocation3 + $0x8] sm:$0xf]
    %v66 = vld [vmem:[#allocation3 + $0xc] sm:$0xf]
    %v67 = vld [vmem:[#allocation3 + $0x10] sm:$0xf]
    %v68 = vld [vmem:[#allocation3 + $0x14] sm:$0xf]
    %v69 = vld [vmem:[#allocation3 + $0x18] sm:$0xf]
    %v70 = vld [vmem:[#allocation3 + $0x1c] sm:$0xf]
    %v71 = vld [vmem:[%s2] sm:$0x1]
    %v72 = vpack.c.bf16 %v62, %v62
    %v74 = vperm.slane %v71, 0
    %v84 = vunpack.c.l.b16 %v63
    %v85 = vunpack.c.l.b16 %v64
    %v86 = vunpack.c.l.b16 %v65
    %v87 = vunpack.c.l.b16 %v66
    %v88 = vunpack.c.l.b16 %v67
    %v89 = vunpack.c.l.b16 %v68
    %v90 = vunpack.c.l.b16 %v69
    %v91 = vunpack.c.l.b16 %v70
    %v92 = vpack.c.b16 %v85, %v84
    %v93 = vpack.c.b16 %v87, %v86
    %v94 = vpack.c.b16 %v89, %v88
    %v95 = vpack.c.b16 %v91, %v90
    %vm100 = vcmask 523264
    %v102 = vsel %vm100, %v72, 0
    %104 = vmatpush.bf16.msra.mxu0 0
    %105 = vmatpush.bf16.msra.mxu0 0
    %106 = vmatpush.bf16.msra.mxu0 0
    %107 = vmatpush.bf16.msra.mxu0 0
    %108 = vmatpush.bf16.msra.mxu0 %v95
    %109 = vmatpush.bf16.msra.mxu0 %v94
    %110 = vmatpush.bf16.msra.mxu0 %v93
    %111 = vmatpush.bf16.msra.mxu0 %v92
    %112 = vmatmul.bf16.gmra.mxu0 %v102
    %v113 = vpop.f32.mrf.mxu0
    %v114 = vadd.f32 %v74, %v113
    %v115 = vpop.f32.mrf.mxu0
    %116 = vdwg.mxu0
    %v117 = vmax.f32 %v114, 0.0
    %v118 = vld [vmem:[#allocation6] sm:$0xf]
    %v119 = vld [vmem:[#allocation6 + $0x4] sm:$0xf]
    %v120 = vld [vmem:[#allocation6 + $0x8] sm:$0xf]
    %v121 = vld [vmem:[#allocation6 + $0xc] sm:$0xf]
    %v122 = vld [vmem:[#allocation6 + $0x10] sm:$0xf]
    %v123 = vld [vmem:[#allocation6 + $0x14] sm:$0xf]
    %v124 = vld [vmem:[#allocation6 + $0x18] sm:$0xf]
    %v125 = vld [vmem:[#allocation6 + $0x1c] sm:$0xf]
    %v126 = vld [vmem:[#allocation6 + $0x20] sm:$0xf]
    %v127 = vld [vmem:[#allocation6 + $0x24] sm:$0xf]
    %v128 = vld [vmem:[#allocation6 + $0x28] sm:$0xf]
    %v129 = vld [vmem:[#allocation6 + $0x2c] sm:$0xf]
    %v130 = vld [vmem:[#allocation6 + $0x30] sm:$0xf]
    %v131 = vld [vmem:[#allocation6 + $0x34] sm:$0xf]
    %v132 = vld [vmem:[#allocation6 + $0x38] sm:$0xf]
    %v133 = vld [vmem:[#allocation6 + $0x3c] sm:$0xf]
    %v134 = vld [vmem:[%s4] sm:$0x1]
    %v135 = vpack.c.bf16 %v117, %v117
    %v137 = vperm.slane %v134, 0
    %v155 = vunpack.c.l.b16 %v118
    %v156 = vunpack.c.l.b16 %v119
    %v157 = vunpack.c.l.b16 %v120
    %v158 = vunpack.c.l.b16 %v121
    %v159 = vunpack.c.l.b16 %v122
    %v160 = vunpack.c.l.b16 %v123
    %v161 = vunpack.c.l.b16 %v124
    %v162 = vunpack.c.l.b16 %v125
    %v163 = vunpack.c.l.b16 %v126
    %v164 = vunpack.c.l.b16 %v127
    %v165 = vunpack.c.l.b16 %v128
    %v166 = vunpack.c.l.b16 %v129
    %v167 = vunpack.c.l.b16 %v130
    %v168 = vunpack.c.l.b16 %v131
    %v169 = vunpack.c.l.b16 %v132
    %v170 = vunpack.c.l.b16 %v133
    %v171 = vpack.c.b16 %v156, %v155
    %v172 = vpack.c.b16 %v158, %v157
    %v173 = vpack.c.b16 %v160, %v159
    %v174 = vpack.c.b16 %v162, %v161
    %v175 = vpack.c.b16 %v164, %v163
    %v176 = vpack.c.b16 %v166, %v165
    %v177 = vpack.c.b16 %v168, %v167
    %v178 = vpack.c.b16 %v170, %v169
    %187 = vmatpush.bf16.msra.mxu0 %v178
    %188 = vmatpush.bf16.msra.mxu0 %v177
    %189 = vmatpush.bf16.msra.mxu0 %v176
    %190 = vmatpush.bf16.msra.mxu0 %v175
    %191 = vmatpush.bf16.msra.mxu0 %v174
    %192 = vmatpush.bf16.msra.mxu0 %v173
    %193 = vmatpush.bf16.msra.mxu0 %v172
    %194 = vmatpush.bf16.msra.mxu0 %v171
    %195 = vmatmul.bf16.gmra.mxu0 %v135
    %v196 = vpop.f32.mrf.mxu0
    %v197 = vadd.f32 %v137, %v196
    %v198 = vpop.f32.mrf.mxu0
    %199 = vdwg.mxu0
    %v200 = vmax.f32 %v197, 0.0
    %v201 = vld [vmem:[%s5] sm:$0x1]
    %v202 = vld [vmem:[#allocation2] sm:$0x1]
    %204 = vset.pattern.permute.xlu0 0
    %205 = vperm.xlu0 %204, %v202
    %v206 = vpop.permute.xlu0 %205
    %v208 = vperm.slane %v206, 0
    %209 = vmatpush.xpose.msra.mxu0 0.0
    %210 = vmatpush.xpose.msra.mxu0 0.0
    %211 = vmatpush.xpose.msra.mxu0 0.0
    %212 = vmatpush.xpose.msra.mxu0 0.0
    %213 = vmatpush.xpose.msra.mxu0 0.0
    %214 = vmatpush.xpose.msra.mxu0 0.0
    %215 = vmatpush.xpose.msra.mxu0 0.0
    %216 = vmatpush.xpose.msra.mxu0 0.0
    %217 = vmatpush.xpose.msra.mxu0 0.0
    %218 = vmatpush.xpose.msra.mxu0 0.0
    %219 = vmatpush.xpose.msra.mxu0 0.0
    %220 = vmatpush.xpose.msra.mxu0 0.0
    %221 = vmatpush.xpose.msra.mxu0 0.0
    %222 = vmatpush.xpose.msra.mxu0 0.0
    %223 = vmatpush.xpose.msra.mxu0 0.0
    %224 = vmatpush.xpose.msra.mxu0 %v200
    %225 = vmatmul.f32.gmra.mxu0 %v201
    %v226 = vpop.f32.mrf.mxu0
    %v227 = vadd.f32 %v208, %v226
    %228 = vdwg.mxu0
    %vm229 = vcmask 8192
    %230 = vst.msk [vmem:[#allocation8] sm:$0x1] %vm229, %v227
    // Predicated region
    $region38: #{tpu_custom_call.1} parent=1 // pred_check
      _
    $region39: #{tpu_custom_call.1} parent=1 // pred_check_branch
      %232 = sbr.rel (0) target = $region41
    $region40: #{tpu_custom_call.1} parent=1 // pred_region
      %234 = vsyncadd [#allocation5], 0
      %s236 = sshll.u32 [#allocation8], 4
      %s237 = int_to_ptr.vmem [resolvable:$true] %s236
      %s238 = sshll.u32 %s7, 4
      %s239 = int_to_ptr.hbm [resolvable:$true] %s238
      %241 = dma.vmem_to_hbm [thread:$0]  %s237, 16, %s239, [#allocation5]
    $region41: #{tpu_custom_call.1} parent=1 // pred_fallthru
      _
    // Predicated region
    $region42: #{tpu_custom_call.1} parent=1 // pred_check
      _
    $region43: #{tpu_custom_call.1} parent=1 // pred_check_branch
      %243 = sbr.rel (0) target = $region45
    $region44: #{tpu_custom_call.1} parent=1 // pred_region
      %245 = dma.done [#allocation5], 16
    $region45: #{tpu_custom_call.1} parent=1 // pred_fallthru
      _
    %246 = vsyncpa [#allocation4], 1
    %247 = vsyncpa [#allocation7], 1
    %248 = vsyncpa [#allocation5], 1

</llo_original>
